<compile_context>
chip_gen: v7x
topology: tpu7x:2x2x1
jax: 0.10.0
libtpu: 0.0.40
codegen_flags: <defaults>
</compile_context>

<pallas_src>
import functools

import numpy as np
import jax
import jax.numpy as jnp
from jax.experimental import pallas as pl
from jax.experimental.pallas import tpu as pltpu

WIDTH = 800
HEIGHT = 800

LANE = 128
MAX_TILE_ROWS = 512          # 512 rows x 128 lanes = 65,536 points per grid step


# ---------------------------------------------------------------------------
# Pallas kernel: pinhole projection of one point-row tile for all cameras.
# ---------------------------------------------------------------------------
def _project_kernel(p_ref, x_ref, o_ref, *, num_cameras):
    """p_ref : SMEM (C*12,) f32 — rows 0..2 of P = K @ E, row-major per camera
               (p_ref[12*c + 4*r + j] == P[c, r, j]).
       x_ref : VMEM (C, 3, tile_r, 128) f32 — x/y/z coordinate planes, points
               dense over (sublane, lane).
       o_ref : VMEM (C, 2, tile_r, 128) f32 — u, v pixel planes (full-vreg stores)."""
    for c in range(num_cameras):                  # C is tiny & static -> unrolled
        b = 12 * c
        x = x_ref[c, 0]
        y = x_ref[c, 1]
        z = x_ref[c, 2]
        # VPU broadcast-FMAs; the homogeneous 1 is folded into the +p[.,3] terms.
        u = p_ref[b + 0] * x + p_ref[b + 1] * y + p_ref[b + 2] * z + p_ref[b + 3]
        v = p_ref[b + 4] * x + p_ref[b + 5] * y + p_ref[b + 6] * z + p_ref[b + 7]
        w = p_ref[b + 8] * x + p_ref[b + 9] * y + p_ref[b + 10] * z + p_ref[b + 11]
        # EUP approximate reciprocal + one Newton step: ~f32-exact while keeping
        # the divide off the VALU slots.  Padded columns are all-zero points, so
        # their w equals P[c,2,3] (camera z-translation, far from 0); genuine
        # z~0 points blow up exactly like the torch reference (inf/huge).
        w_inv = pl.reciprocal(w, approx=True)
        w_inv = w_inv * (2.0 - w * w_inv)
        o_ref[c, 0] = u * w_inv
        o_ref[c, 1] = v * w_inv


def project_points_pallas(p12, x, *, tile_r):
    """p12: (C*12,) f32 projection scalars; x: (C, 3, rows, 128) f32 points."""
    C, _, rows, lane = x.shape
    assert lane == LANE
    assert rows % tile_r == 0
    kernel = functools.partial(_project_kernel, num_cameras=C)
    return pl.pallas_call(
        kernel,
        out_shape=jax.ShapeDtypeStruct((C, 2, rows, LANE), jnp.float32),
        grid=(rows // tile_r,),
        in_specs=[
            # 12 scalars per camera, flat 1-D and resident in SMEM (no per-step
            # tiny DMAs, no 2-D SMEM padding blow-up, no MXU involvement).
            pl.BlockSpec(memory_space=pltpu.MemorySpace.SMEM),
            # Point tiles: last two dims are (tile_r, 128) -> lane/sublane dense.
            pl.BlockSpec((C, 3, tile_r, LANE), lambda t: (0, 0, t, 0)),
        ],
        out_specs=pl.BlockSpec((C, 2, tile_r, LANE), lambda t: (0, 0, t, 0)),
        compiler_params=pltpu.CompilerParams(
            dimension_semantics=("parallel",)),   # point-tile axis: balances v7x's 2 TCs
    )(p12, x)


# ---------------------------------------------------------------------------
# JAX glue (matches the torch helper functions used by the module)
# ---------------------------------------------------------------------------
def params_to_extrinsic(params):
    """(C, 6) axis-angle + translation -> (C, 4, 4) extrinsic (Rodrigues)."""
    rvec = params[:, :3]
    t = params[:, 3:6]
    theta = jnp.sqrt(jnp.sum(rvec * rvec, axis=-1, keepdims=True) + 1e-12)
    k = rvec / theta
    kx, ky, kz = k[:, 0], k[:, 1], k[:, 2]
    zero = jnp.zeros_like(kx)
    Kmat = jnp.stack(
        [
            jnp.stack([zero, -kz, ky], axis=-1),
            jnp.stack([kz, zero, -kx], axis=-1),
            jnp.stack([-ky, kx, zero], axis=-1),
        ],
        axis=-2,
    )                                                       # (C, 3, 3)
    I = jnp.eye(3, dtype=params.dtype)[None]
    s = jnp.sin(theta)[..., None]
    c = jnp.cos(theta)[..., None]
    R = I + s * Kmat + (1.0 - c) * (Kmat @ Kmat)
    top = jnp.concatenate([R, t[:, :, None]], axis=-1)      # (C, 3, 4)
    bottom = jnp.tile(
        jnp.array([[[0.0, 0.0, 0.0, 1.0]]], dtype=params.dtype),
        (params.shape[0], 1, 1),
    )
    return jnp.concatenate([top, bottom], axis=-2)          # (C, 4, 4)


def create_intrinsic(K3):
    C = K3.shape[0]
    K4 = jnp.zeros((C, 4, 4), K3.dtype)
    K4 = K4.at[:, :3, :3].set(K3)
    K4 = K4.at[:, 3, 3].set(1.0)
    return K4


def get_intrinsics(camera_angle_x, num_cameras):
    f = WIDTH / (2.0 * jnp.tan(camera_angle_x / 2.0))
    K = jnp.eye(3, dtype=jnp.float32)[None]
    K = K.at[0, 0, 2].set(WIDTH / 2.0)
    K = K.at[0, 1, 2].set(HEIGHT / 2.0)
    K = K.at[0, 0, 0].set(f)
    K = K.at[0, 1, 1].set(f)
    return jnp.tile(create_intrinsic(K), (num_cameras, 1, 1))


@functools.partial(jax.jit, static_argnames=("tile_r",))
def _device_forward(camera_angle_x, extrinsics_params, x, *, tile_r):
    """Single fused jit: intrinsics, extrinsics, P = K @ E, scalar packing and the
    Pallas projection — one dispatch, tiny 4x4 math never touches HBM."""
    C = extrinsics_params.shape[0]
    intrinsics = get_intrinsics(camera_angle_x, C)           # (C, 4, 4)
    extrinsics = params_to_extrinsic(extrinsics_params)      # (C, 4, 4)
    P = intrinsics @ extrinsics                               # (C, 4, 4)
    p12 = P[:, :3, :].reshape(C * 12).astype(jnp.float32)     # (C*12,) flat SMEM operand
    return project_points_pallas(p12, x, tile_r=tile_r)      # (C, 2, rows, 128)


# ---------------------------------------------------------------------------
# Host-side preprocessing (numpy, directly in kernel layout — no device transposes)
# ---------------------------------------------------------------------------
def _choose_tiling(max_count):
    """Pick padded point count, row count and per-step row tile."""
    rows = max(1, (int(max_count) + LANE - 1) // LANE)
    if rows <= 8:
        tile_r = rows                              # single tiny tile == full extent
    else:
        rows = ((rows + 7) // 8) * 8               # 8-sublane aligned rows
        # >= 2 grid steps so v7x's two TensorCores share the parallel axis, capped
        # so the double-buffered VMEM footprint stays a few MiB.
        tile_r = min(MAX_TILE_ROWS, max(8, (rows // 2) // 8 * 8))
        rows = ((rows + tile_r - 1) // tile_r) * tile_r
    return rows * LANE, rows, tile_r


def preprocess_points3d_host(points3d_np, visibility_np, npad):
    """Per-camera visible points, zero-padded, coordinate-major, reshaped to
    (C, 3, rows, 128) — exactly the kernel layout."""
    C = visibility_np.shape[1]
    rows = npad // LANE
    counts = visibility_np.sum(0).astype(np.int32)
    x = np.zeros((C, 3, npad), np.float32)
    for c in range(C):
        idx = np.nonzero(visibility_np[:, c])[0]
        x[c, :, : idx.shape[0]] = points3d_np[idx].T
    return x.reshape(C, 3, rows, LANE), counts


# ---------------------------------------------------------------------------
# Forward pass (== ProjectionModel.forward, shared_camera=True)
# ---------------------------------------------------------------------------
def projection_forward(camera_angle_x, extrinsics_params, points3d, visibility_np):
    points3d_np = np.asarray(points3d, dtype=np.float32)
    counts_all = visibility_np.sum(0)
    npad, rows, tile_r = _choose_tiling(counts_all.max())

    x_np, counts = preprocess_points3d_host(points3d_np, visibility_np, npad)
    x = jnp.asarray(x_np)                                     # (C, 3, rows, 128)

    uv = _device_forward(jnp.float32(camera_angle_x), extrinsics_params, x,
                         tile_r=tile_r)                       # (C, 2, rows, 128)
    uv_host = np.asarray(jax.block_until_ready(uv))           # single D->H copy
    uv_flat = uv_host.reshape(uv_host.shape[0], 2, npad)      # free numpy view

    # TODO(synk): the ragged per-camera output list has no single-array Pallas
    # form; the slicing and the (u,v) re-interleave are one cheap host pass.
    return [
        np.stack([uv_flat[c, 0, : int(counts[c])],
                  uv_flat[c, 1, : int(counts[c])]], axis=-1)
        for c in range(uv_flat.shape[0])
    ]


# Pure reference (no Pallas) for a sanity check of the kernel math.
def projection_reference(camera_angle_x, extrinsics_params, points3d, visibility_np):
    C = extrinsics_params.shape[0]
    intrinsics = get_intrinsics(jnp.float32(camera_angle_x), C)
    extrinsics = params_to_extrinsic(extrinsics_params)
    P = np.asarray(intrinsics @ extrinsics)                   # (C, 4, 4)
    pts = np.asarray(points3d, np.float32)
    outs = []
    for c in range(C):
        idx = np.nonzero(visibility_np[:, c])[0]
        xh = np.concatenate([pts[idx], np.ones((idx.shape[0], 1), np.float32)], axis=-1)
        proj = xh @ P[c].T
        outs.append(proj[:, :2] / proj[:, 2:3])
    return outs


if __name__ == "__main__":
    key = jax.random.PRNGKey(0)
    k_rot, k_txy, k_tz, k_pts, k_vis = jax.random.split(key, 5)

    num_cameras = 3
    num_points = 40

    # Parameters (deterministic, synthetic — shapes as implied by __init__).
    camera_angle_x = jnp.float32(0.6911112070083618)
    rot = 0.1 * jax.random.normal(k_rot, (num_cameras, 3), jnp.float32)
    t_xy = 0.5 * jax.random.normal(k_txy, (num_cameras, 2), jnp.float32)
    t_z = 4.0 + 0.5 * jax.random.uniform(k_tz, (num_cameras, 1), jnp.float32)
    extrinsics_params = jnp.concatenate([rot, t_xy, t_z], axis=-1)      # (3, 6)
    points3d = jax.random.normal(k_pts, (num_points, 3), jnp.float32)   # (40, 3)

    visibility = np.array(
        jax.random.bernoulli(k_vis, 0.7, (num_points, num_cameras))
    ).astype(bool)                                                       # (40, 3)
    visibility[0, :] = True  # every camera sees at least one point

    outputs = projection_forward(camera_angle_x, extrinsics_params, points3d, visibility)

    refs = projection_reference(camera_angle_x, extrinsics_params, points3d, visibility)
    for o, r in zip(outputs, refs):
        np.testing.assert_allclose(np.asarray(o), np.asarray(r), rtol=1e-3, atol=1e-2)

    print("KERNEL_OK")
</pallas_src>

<mosaic_0001>
module attributes {stable_mosaic.version = 11 : i64} {
  func.func @_project_kernel(%arg0: i32, %arg1: memref<36xf32, #tpu.memory_space<smem>>, %arg2: memref<3x3x1x128xf32, #tpu.memory_space<vmem>>, %arg3: memref<3x2x1x128xf32, #tpu.memory_space<vmem>>) attributes {dimension_semantics = [#tpu.dimension_semantics<parallel>], iteration_bounds = array<i64: 1>, scalar_prefetch = 0 : i64, scratch_operands = 0 : i64, tpu.core_type = #tpu.core_type<tc>, window_params = [{transform_indices = @transform_0, window_bounds = array<i64: 36>}, {transform_indices = @transform_1, window_bounds = array<i64: 3, 3, 1, 128>}, {transform_indices = @transform_2, window_bounds = array<i64: 3, 2, 1, 128>}]} {
    %c0 = arith.constant 0 : index
    %c0_0 = arith.constant 0 : index
    %c0_1 = arith.constant 0 : index
    %c0_2 = arith.constant 0 : index
    %0 = vector.load %arg2[%c0, %c0_0, %c0_1, %c0_2] : memref<3x3x1x128xf32, #tpu.memory_space<vmem>>, vector<1x1x1x128xf32>
    %1 = vector.shape_cast %0 : vector<1x1x1x128xf32> to vector<1x128xf32>
    %c0_3 = arith.constant 0 : index
    %c1 = arith.constant 1 : index
    %c0_4 = arith.constant 0 : index
    %c0_5 = arith.constant 0 : index
    %2 = vector.load %arg2[%c0_3, %c1, %c0_4, %c0_5] : memref<3x3x1x128xf32, #tpu.memory_space<vmem>>, vector<1x1x1x128xf32>
    %3 = vector.shape_cast %2 : vector<1x1x1x128xf32> to vector<1x128xf32>
    %c0_6 = arith.constant 0 : index
    %c2 = arith.constant 2 : index
    %c0_7 = arith.constant 0 : index
    %c0_8 = arith.constant 0 : index
    %4 = vector.load %arg2[%c0_6, %c2, %c0_7, %c0_8] : memref<3x3x1x128xf32, #tpu.memory_space<vmem>>, vector<1x1x1x128xf32>
    %5 = vector.shape_cast %4 : vector<1x1x1x128xf32> to vector<1x128xf32>
    %c0_9 = arith.constant 0 : index
    %6 = memref.load %arg1[%c0_9] : memref<36xf32, #tpu.memory_space<smem>>
    %7 = vector.broadcast %6 : f32 to vector<1x128xf32>
    %8 = arith.mulf %7, %1 : vector<1x128xf32>
    %c1_10 = arith.constant 1 : index
    %9 = memref.load %arg1[%c1_10] : memref<36xf32, #tpu.memory_space<smem>>
    %10 = vector.broadcast %9 : f32 to vector<1x128xf32>
    %11 = arith.mulf %10, %3 : vector<1x128xf32>
    %12 = arith.addf %8, %11 : vector<1x128xf32>
    %c2_11 = arith.constant 2 : index
    %13 = memref.load %arg1[%c2_11] : memref<36xf32, #tpu.memory_space<smem>>
    %14 = vector.broadcast %13 : f32 to vector<1x128xf32>
    %15 = arith.mulf %14, %5 : vector<1x128xf32>
    %16 = arith.addf %12, %15 : vector<1x128xf32>
    %c3 = arith.constant 3 : index
    %17 = memref.load %arg1[%c3] : memref<36xf32, #tpu.memory_space<smem>>
    %18 = vector.broadcast %17 : f32 to vector<1x128xf32>
    %19 = arith.addf %16, %18 : vector<1x128xf32>
    %c4 = arith.constant 4 : index
    %20 = memref.load %arg1[%c4] : memref<36xf32, #tpu.memory_space<smem>>
    %21 = vector.broadcast %20 : f32 to vector<1x128xf32>
    %22 = arith.mulf %21, %1 : vector<1x128xf32>
    %c5 = arith.constant 5 : index
    %23 = memref.load %arg1[%c5] : memref<36xf32, #tpu.memory_space<smem>>
    %24 = vector.broadcast %23 : f32 to vector<1x128xf32>
    %25 = arith.mulf %24, %3 : vector<1x128xf32>
    %26 = arith.addf %22, %25 : vector<1x128xf32>
    %c6 = arith.constant 6 : index
    %27 = memref.load %arg1[%c6] : memref<36xf32, #tpu.memory_space<smem>>
    %28 = vector.broadcast %27 : f32 to vector<1x128xf32>
    %29 = arith.mulf %28, %5 : vector<1x128xf32>
    %30 = arith.addf %26, %29 : vector<1x128xf32>
    %c7 = arith.constant 7 : index
    %31 = memref.load %arg1[%c7] : memref<36xf32, #tpu.memory_space<smem>>
    %32 = vector.broadcast %31 : f32 to vector<1x128xf32>
    %33 = arith.addf %30, %32 : vector<1x128xf32>
    %c8 = arith.constant 8 : index
    %34 = memref.load %arg1[%c8] : memref<36xf32, #tpu.memory_space<smem>>
    %35 = vector.broadcast %34 : f32 to vector<1x128xf32>
    %36 = arith.mulf %35, %1 : vector<1x128xf32>
    %c9 = arith.constant 9 : index
    %37 = memref.load %arg1[%c9] : memref<36xf32, #tpu.memory_space<smem>>
    %38 = vector.broadcast %37 : f32 to vector<1x128xf32>
    %39 = arith.mulf %38, %3 : vector<1x128xf32>
    %40 = arith.addf %36, %39 : vector<1x128xf32>
    %c10 = arith.constant 10 : index
    %41 = memref.load %arg1[%c10] : memref<36xf32, #tpu.memory_space<smem>>
    %42 = vector.broadcast %41 : f32 to vector<1x128xf32>
    %43 = arith.mulf %42, %5 : vector<1x128xf32>
    %44 = arith.addf %40, %43 : vector<1x128xf32>
    %c11 = arith.constant 11 : index
    %45 = memref.load %arg1[%c11] : memref<36xf32, #tpu.memory_space<smem>>
    %46 = vector.broadcast %45 : f32 to vector<1x128xf32>
    %47 = arith.addf %44, %46 : vector<1x128xf32>
    %48 = tpu.reciprocal %47 {approx = true} : vector<1x128xf32> -> vector<1x128xf32>
    %49 = arith.mulf %47, %48 : vector<1x128xf32>
    %cst = arith.constant 2.000000e+00 : f32
    %50 = vector.broadcast %cst : f32 to vector<1x128xf32>
    %51 = arith.subf %50, %49 : vector<1x128xf32>
    %52 = arith.mulf %48, %51 : vector<1x128xf32>
    %53 = arith.mulf %19, %52 : vector<1x128xf32>
    %c0_12 = arith.constant 0 : index
    %c0_13 = arith.constant 0 : index
    %c0_14 = arith.constant 0 : index
    %c0_15 = arith.constant 0 : index
    %54 = vector.load %arg3[%c0_12, %c0_13, %c0_14, %c0_15] : memref<3x2x1x128xf32, #tpu.memory_space<vmem>>, vector<1x1x1x128xf32>
    %55 = vector.shape_cast %54 : vector<1x1x1x128xf32> to vector<1x128xf32>
    %56 = vector.shape_cast %53 : vector<1x128xf32> to vector<1x1x1x128xf32>
    tpu.vector_store %arg3[%c0_12, %c0_13, %c0_14, %c0_15], %56 {strides = array<i32>} : memref<3x2x1x128xf32, #tpu.memory_space<vmem>>, vector<1x1x1x128xf32>,
    %57 = arith.mulf %33, %52 : vector<1x128xf32>
    %c0_16 = arith.constant 0 : index
    %c1_17 = arith.constant 1 : index
    %c0_18 = arith.constant 0 : index
    %c0_19 = arith.constant 0 : index
    %58 = vector.load %arg3[%c0_16, %c1_17, %c0_18, %c0_19] : memref<3x2x1x128xf32, #tpu.memory_space<vmem>>, vector<1x1x1x128xf32>
    %59 = vector.shape_cast %58 : vector<1x1x1x128xf32> to vector<1x128xf32>
    %60 = vector.shape_cast %57 : vector<1x128xf32> to vector<1x1x1x128xf32>
    tpu.vector_store %arg3[%c0_16, %c1_17, %c0_18, %c0_19], %60 {strides = array<i32>} : memref<3x2x1x128xf32, #tpu.memory_space<vmem>>, vector<1x1x1x128xf32>,
    %c1_20 = arith.constant 1 : index
    %c0_21 = arith.constant 0 : index
    %c0_22 = arith.constant 0 : index
    %c0_23 = arith.constant 0 : index
    %61 = vector.load %arg2[%c1_20, %c0_21, %c0_22, %c0_23] : memref<3x3x1x128xf32, #tpu.memory_space<vmem>>, vector<1x1x1x128xf32>
    %62 = vector.shape_cast %61 : vector<1x1x1x128xf32> to vector<1x128xf32>
    %c1_24 = arith.constant 1 : index
    %c1_25 = arith.constant 1 : index
    %c0_26 = arith.constant 0 : index
    %c0_27 = arith.constant 0 : index
    %63 = vector.load %arg2[%c1_24, %c1_25, %c0_26, %c0_27] : memref<3x3x1x128xf32, #tpu.memory_space<vmem>>, vector<1x1x1x128xf32>
    %64 = vector.shape_cast %63 : vector<1x1x1x128xf32> to vector<1x128xf32>
    %c1_28 = arith.constant 1 : index
    %c2_29 = arith.constant 2 : index
    %c0_30 = arith.constant 0 : index
    %c0_31 = arith.constant 0 : index
    %65 = vector.load %arg2[%c1_28, %c2_29, %c0_30, %c0_31] : memref<3x3x1x128xf32, #tpu.memory_space<vmem>>, vector<1x1x1x128xf32>
    %66 = vector.shape_cast %65 : vector<1x1x1x128xf32> to vector<1x128xf32>
    %c12 = arith.constant 12 : index
    %67 = memref.load %arg1[%c12] : memref<36xf32, #tpu.memory_space<smem>>
    %68 = vector.broadcast %67 : f32 to vector<1x128xf32>
    %69 = arith.mulf %68, %62 : vector<1x128xf32>
    %c13 = arith.constant 13 : index
    %70 = memref.load %arg1[%c13] : memref<36xf32, #tpu.memory_space<smem>>
    %71 = vector.broadcast %70 : f32 to vector<1x128xf32>
    %72 = arith.mulf %71, %64 : vector<1x128xf32>
    %73 = arith.addf %69, %72 : vector<1x128xf32>
    %c14 = arith.constant 14 : index
    %74 = memref.load %arg1[%c14] : memref<36xf32, #tpu.memory_space<smem>>
    %75 = vector.broadcast %74 : f32 to vector<1x128xf32>
    %76 = arith.mulf %75, %66 : vector<1x128xf32>
    %77 = arith.addf %73, %76 : vector<1x128xf32>
    %c15 = arith.constant 15 : index
    %78 = memref.load %arg1[%c15] : memref<36xf32, #tpu.memory_space<smem>>
    %79 = vector.broadcast %78 : f32 to vector<1x128xf32>
    %80 = arith.addf %77, %79 : vector<1x128xf32>
    %c16 = arith.constant 16 : index
    %81 = memref.load %arg1[%c16] : memref<36xf32, #tpu.memory_space<smem>>
    %82 = vector.broadcast %81 : f32 to vector<1x128xf32>
    %83 = arith.mulf %82, %62 : vector<1x128xf32>
    %c17 = arith.constant 17 : index
    %84 = memref.load %arg1[%c17] : memref<36xf32, #tpu.memory_space<smem>>
    %85 = vector.broadcast %84 : f32 to vector<1x128xf32>
    %86 = arith.mulf %85, %64 : vector<1x128xf32>
    %87 = arith.addf %83, %86 : vector<1x128xf32>
    %c18 = arith.constant 18 : index
    %88 = memref.load %arg1[%c18] : memref<36xf32, #tpu.memory_space<smem>>
    %89 = vector.broadcast %88 : f32 to vector<1x128xf32>
    %90 = arith.mulf %89, %66 : vector<1x128xf32>
    %91 = arith.addf %87, %90 : vector<1x128xf32>
    %c19 = arith.constant 19 : index
    %92 = memref.load %arg1[%c19] : memref<36xf32, #tpu.memory_space<smem>>
    %93 = vector.broadcast %92 : f32 to vector<1x128xf32>
    %94 = arith.addf %91, %93 : vector<1x128xf32>
    %c20 = arith.constant 20 : index
    %95 = memref.load %arg1[%c20] : memref<36xf32, #tpu.memory_space<smem>>
    %96 = vector.broadcast %95 : f32 to vector<1x128xf32>
    %97 = arith.mulf %96, %62 : vector<1x128xf32>
    %c21 = arith.constant 21 : index
    %98 = memref.load %arg1[%c21] : memref<36xf32, #tpu.memory_space<smem>>
    %99 = vector.broadcast %98 : f32 to vector<1x128xf32>
    %100 = arith.mulf %99, %64 : vector<1x128xf32>
    %101 = arith.addf %97, %100 : vector<1x128xf32>
    %c22 = arith.constant 22 : index
    %102 = memref.load %arg1[%c22] : memref<36xf32, #tpu.memory_space<smem>>
    %103 = vector.broadcast %102 : f32 to vector<1x128xf32>
    %104 = arith.mulf %103, %66 : vector<1x128xf32>
    %105 = arith.addf %101, %104 : vector<1x128xf32>
    %c23 = arith.constant 23 : index
    %106 = memref.load %arg1[%c23] : memref<36xf32, #tpu.memory_space<smem>>
    %107 = vector.broadcast %106 : f32 to vector<1x128xf32>
    %108 = arith.addf %105, %107 : vector<1x128xf32>
    %109 = tpu.reciprocal %108 {approx = true} : vector<1x128xf32> -> vector<1x128xf32>
    %110 = arith.mulf %108, %109 : vector<1x128xf32>
    %cst_32 = arith.constant 2.000000e+00 : f32
    %111 = vector.broadcast %cst_32 : f32 to vector<1x128xf32>
    %112 = arith.subf %111, %110 : vector<1x128xf32>
    %113 = arith.mulf %109, %112 : vector<1x128xf32>
    %114 = arith.mulf %80, %113 : vector<1x128xf32>
    %c1_33 = arith.constant 1 : index
    %c0_34 = arith.constant 0 : index
    %c0_35 = arith.constant 0 : index
    %c0_36 = arith.constant 0 : index
    %115 = vector.load %arg3[%c1_33, %c0_34, %c0_35, %c0_36] : memref<3x2x1x128xf32, #tpu.memory_space<vmem>>, vector<1x1x1x128xf32>
    %116 = vector.shape_cast %115 : vector<1x1x1x128xf32> to vector<1x128xf32>
    %117 = vector.shape_cast %114 : vector<1x128xf32> to vector<1x1x1x128xf32>
    tpu.vector_store %arg3[%c1_33, %c0_34, %c0_35, %c0_36], %117 {strides = array<i32>} : memref<3x2x1x128xf32, #tpu.memory_space<vmem>>, vector<1x1x1x128xf32>,
    %118 = arith.mulf %94, %113 : vector<1x128xf32>
    %c1_37 = arith.constant 1 : index
    %c1_38 = arith.constant 1 : index
    %c0_39 = arith.constant 0 : index
    %c0_40 = arith.constant 0 : index
    %119 = vector.load %arg3[%c1_37, %c1_38, %c0_39, %c0_40] : memref<3x2x1x128xf32, #tpu.memory_space<vmem>>, vector<1x1x1x128xf32>
    %120 = vector.shape_cast %119 : vector<1x1x1x128xf32> to vector<1x128xf32>
    %121 = vector.shape_cast %118 : vector<1x128xf32> to vector<1x1x1x128xf32>
    tpu.vector_store %arg3[%c1_37, %c1_38, %c0_39, %c0_40], %121 {strides = array<i32>} : memref<3x2x1x128xf32, #tpu.memory_space<vmem>>, vector<1x1x1x128xf32>,
    %c2_41 = arith.constant 2 : index
    %c0_42 = arith.constant 0 : index
    %c0_43 = arith.constant 0 : index
    %c0_44 = arith.constant 0 : index
    %122 = vector.load %arg2[%c2_41, %c0_42, %c0_43, %c0_44] : memref<3x3x1x128xf32, #tpu.memory_space<vmem>>, vector<1x1x1x128xf32>
    %123 = vector.shape_cast %122 : vector<1x1x1x128xf32> to vector<1x128xf32>
    %c2_45 = arith.constant 2 : index
    %c1_46 = arith.constant 1 : index
    %c0_47 = arith.constant 0 : index
    %c0_48 = arith.constant 0 : index
    %124 = vector.load %arg2[%c2_45, %c1_46, %c0_47, %c0_48] : memref<3x3x1x128xf32, #tpu.memory_space<vmem>>, vector<1x1x1x128xf32>
    %125 = vector.shape_cast %124 : vector<1x1x1x128xf32> to vector<1x128xf32>
    %c2_49 = arith.constant 2 : index
    %c2_50 = arith.constant 2 : index
    %c0_51 = arith.constant 0 : index
    %c0_52 = arith.constant 0 : index
    %126 = vector.load %arg2[%c2_49, %c2_50, %c0_51, %c0_52] : memref<3x3x1x128xf32, #tpu.memory_space<vmem>>, vector<1x1x1x128xf32>
    %127 = vector.shape_cast %126 : vector<1x1x1x128xf32> to vector<1x128xf32>
    %c24 = arith.constant 24 : index
    %128 = memref.load %arg1[%c24] : memref<36xf32, #tpu.memory_space<smem>>
    %129 = vector.broadcast %128 : f32 to vector<1x128xf32>
    %130 = arith.mulf %129, %123 : vector<1x128xf32>
    %c25 = arith.constant 25 : index
    %131 = memref.load %arg1[%c25] : memref<36xf32, #tpu.memory_space<smem>>
    %132 = vector.broadcast %131 : f32 to vector<1x128xf32>
    %133 = arith.mulf %132, %125 : vector<1x128xf32>
    %134 = arith.addf %130, %133 : vector<1x128xf32>
    %c26 = arith.constant 26 : index
    %135 = memref.load %arg1[%c26] : memref<36xf32, #tpu.memory_space<smem>>
    %136 = vector.broadcast %135 : f32 to vector<1x128xf32>
    %137 = arith.mulf %136, %127 : vector<1x128xf32>
    %138 = arith.addf %134, %137 : vector<1x128xf32>
    %c27 = arith.constant 27 : index
    %139 = memref.load %arg1[%c27] : memref<36xf32, #tpu.memory_space<smem>>
    %140 = vector.broadcast %139 : f32 to vector<1x128xf32>
    %141 = arith.addf %138, %140 : vector<1x128xf32>
    %c28 = arith.constant 28 : index
    %142 = memref.load %arg1[%c28] : memref<36xf32, #tpu.memory_space<smem>>
    %143 = vector.broadcast %142 : f32 to vector<1x128xf32>
    %144 = arith.mulf %143, %123 : vector<1x128xf32>
    %c29 = arith.constant 29 : index
    %145 = memref.load %arg1[%c29] : memref<36xf32, #tpu.memory_space<smem>>
    %146 = vector.broadcast %145 : f32 to vector<1x128xf32>
    %147 = arith.mulf %146, %125 : vector<1x128xf32>
    %148 = arith.addf %144, %147 : vector<1x128xf32>
    %c30 = arith.constant 30 : index
    %149 = memref.load %arg1[%c30] : memref<36xf32, #tpu.memory_space<smem>>
    %150 = vector.broadcast %149 : f32 to vector<1x128xf32>
    %151 = arith.mulf %150, %127 : vector<1x128xf32>
    %152 = arith.addf %148, %151 : vector<1x128xf32>
    %c31 = arith.constant 31 : index
    %153 = memref.load %arg1[%c31] : memref<36xf32, #tpu.memory_space<smem>>
    %154 = vector.broadcast %153 : f32 to vector<1x128xf32>
    %155 = arith.addf %152, %154 : vector<1x128xf32>
    %c32 = arith.constant 32 : index
    %156 = memref.load %arg1[%c32] : memref<36xf32, #tpu.memory_space<smem>>
    %157 = vector.broadcast %156 : f32 to vector<1x128xf32>
    %158 = arith.mulf %157, %123 : vector<1x128xf32>
    %c33 = arith.constant 33 : index
    %159 = memref.load %arg1[%c33] : memref<36xf32, #tpu.memory_space<smem>>
    %160 = vector.broadcast %159 : f32 to vector<1x128xf32>
    %161 = arith.mulf %160, %125 : vector<1x128xf32>
    %162 = arith.addf %158, %161 : vector<1x128xf32>
    %c34 = arith.constant 34 : index
    %163 = memref.load %arg1[%c34] : memref<36xf32, #tpu.memory_space<smem>>
    %164 = vector.broadcast %163 : f32 to vector<1x128xf32>
    %165 = arith.mulf %164, %127 : vector<1x128xf32>
    %166 = arith.addf %162, %165 : vector<1x128xf32>
    %c35 = arith.constant 35 : index
    %167 = memref.load %arg1[%c35] : memref<36xf32, #tpu.memory_space<smem>>
    %168 = vector.broadcast %167 : f32 to vector<1x128xf32>
    %169 = arith.addf %166, %168 : vector<1x128xf32>
    %170 = tpu.reciprocal %169 {approx = true} : vector<1x128xf32> -> vector<1x128xf32>
    %171 = arith.mulf %169, %170 : vector<1x128xf32>
    %cst_53 = arith.constant 2.000000e+00 : f32
    %172 = vector.broadcast %cst_53 : f32 to vector<1x128xf32>
    %173 = arith.subf %172, %171 : vector<1x128xf32>
    %174 = arith.mulf %170, %173 : vector<1x128xf32>
    %175 = arith.mulf %141, %174 : vector<1x128xf32>
    %c2_54 = arith.constant 2 : index
    %c0_55 = arith.constant 0 : index
    %c0_56 = arith.constant 0 : index
    %c0_57 = arith.constant 0 : index
    %176 = vector.load %arg3[%c2_54, %c0_55, %c0_56, %c0_57] : memref<3x2x1x128xf32, #tpu.memory_space<vmem>>, vector<1x1x1x128xf32>
    %177 = vector.shape_cast %176 : vector<1x1x1x128xf32> to vector<1x128xf32>
    %178 = vector.shape_cast %175 : vector<1x128xf32> to vector<1x1x1x128xf32>
    tpu.vector_store %arg3[%c2_54, %c0_55, %c0_56, %c0_57], %178 {strides = array<i32>} : memref<3x2x1x128xf32, #tpu.memory_space<vmem>>, vector<1x1x1x128xf32>,
    %179 = arith.mulf %155, %174 : vector<1x128xf32>
    %c2_58 = arith.constant 2 : index
    %c1_59 = arith.constant 1 : index
    %c0_60 = arith.constant 0 : index
    %c0_61 = arith.constant 0 : index
    %180 = vector.load %arg3[%c2_58, %c1_59, %c0_60, %c0_61] : memref<3x2x1x128xf32, #tpu.memory_space<vmem>>, vector<1x1x1x128xf32>
    %181 = vector.shape_cast %180 : vector<1x1x1x128xf32> to vector<1x128xf32>
    %182 = vector.shape_cast %179 : vector<1x128xf32> to vector<1x1x1x128xf32>
    tpu.vector_store %arg3[%c2_58, %c1_59, %c0_60, %c0_61], %182 {strides = array<i32>} : memref<3x2x1x128xf32, #tpu.memory_space<vmem>>, vector<1x1x1x128xf32>,
    return
  }
  func.func @transform_0(%arg0: i32) -> i32 {
    %c0_i32 = arith.constant 0 : i32
    %c0_i32_0 = arith.constant 0 : i32
    return %c0_i32 : i32
  }
  func.func @transform_1(%arg0: i32) -> (i32, i32, i32, i32) {
    %c0_i32 = arith.constant 0 : i32
    %c0_i32_0 = arith.constant 0 : i32
    %c0_i32_1 = arith.constant 0 : i32
    %c0_i32_2 = arith.constant 0 : i32
    return %c0_i32, %c0_i32_0, %arg0, %c0_i32_1 : i32, i32, i32, i32
  }
  func.func @transform_2(%arg0: i32) -> (i32, i32, i32, i32) {
    %c0_i32 = arith.constant 0 : i32
    %c0_i32_0 = arith.constant 0 : i32
    %c0_i32_1 = arith.constant 0 : i32
    %c0_i32_2 = arith.constant 0 : i32
    return %c0_i32, %c0_i32_0, %arg0, %c0_i32_1 : i32, i32, i32, i32
  }
}

</mosaic_0001>

<llo_original>
// kernel: _device_forward.1
$region0: #{_device_forward.1}
  #allocation0 [shape = 'u32[]', space=smem, size = 0x4, offset = 0x4, fixed_abs, tag = 'smem constant byte address 0x4 - core index']
  #allocation1 [shape = 'u32[144,128]{1,0:T(1,128)}', space=vmem, size = 0x12000, scoped, tag = 'internal scratch']
  %s0 = inlined_call_operand.vmem [shape: f32[36], index: 0, kind: input, shape index: {}]
  %s1 = inlined_call_operand.vmem [shape: f32[3,3,1,128], index: 1, kind: input, shape index: {}]
  %s2 = inlined_call_operand.hbm [shape: f32[3,2,1,128], index: 2, kind: output, shape index: {}]
  %s3 = sld [smem:[#allocation0]]
  $region22: #{_device_forward.1} parent=0
    _
  %s5 = ssub.s32 1, %s3
  %s6 = scalar_select 0, %s5, %s3
  $region1: #{_device_forward.1} parent=0
    #allocation2 [shape = 'u8[512]{0}', space=smem, size = 0x200, scoped, tag = 'input window, operand 0, single buffered']
    #allocation3 [shape = 's32[1]{0}', space=sflag, size = 0x4, scoped, tag = 'scoped memory for _device_forward.1']
    #allocation4 [shape = 's32[1]{0}', space=sflag, size = 0x4, scoped, tag = 'scoped memory for _device_forward.1']
    #allocation5 [shape = 'u8[3072]{0}', space=vmem, size = 0xc00, scoped, tag = 'output window, operand 0, single buffered']
    %7 = vsyncpa [#allocation4], 0
    %8 = vsyncpa [#allocation3], 0
    // Predicated region
    $region2: #{_device_forward.1} parent=1 // pred_check
      _
    $region3: #{_device_forward.1} parent=1 // pred_check_branch
      %10 = sbr.rel (0) target = $region5
    $region4: #{_device_forward.1} parent=1 // pred_region
      %s12 = ssub.s32 16, 16
      %13 = vsyncadd [#allocation4], %s12
      %s15 = sshll.u32 %s0, 4
      %s16 = int_to_ptr.vmem [resolvable:$true] %s15
      %18 = dma.vmem_to_smem %s16, 16, [#allocation2], [#allocation4]
    $region5: #{_device_forward.1} parent=1 // pred_fallthru
      _
    // Predicated region
    $region6: #{_device_forward.1} parent=1 // pred_check
      _
    $region7: #{_device_forward.1} parent=1 // pred_check_branch
      %20 = sbr.rel (0) target = $region9
    $region8: #{_device_forward.1} parent=1 // pred_region
      _
    $region9: #{_device_forward.1} parent=1 // pred_fallthru
      _
    // Predicated region
    $region10: #{_device_forward.1} parent=1 // pred_check
      _
    $region11: #{_device_forward.1} parent=1 // pred_check_branch
      %22 = sbr.rel (0) target = $region13
    $region12: #{_device_forward.1} parent=1 // pred_region
      %23 = dma.done [#allocation4], 16
    $region13: #{_device_forward.1} parent=1 // pred_fallthru
      _
    %24 = sfence
    %v25 = vld [vmem:[%s1] sm:$0x1]
    %s26 = scalar_lea.vmem %s1, 1
    %v27 = vld [vmem:[%s26] sm:$0x1]
    %s28 = scalar_lea.vmem %s1, 2
    %v29 = vld [vmem:[%s28] sm:$0x1]
    %s30 = sld [smem:[#allocation2]]
    %v31 = vstv %s30
    %v32 = vmul.f32 %v31, %v25
    %s33 = sld [smem:[#allocation2 + $0x1]]
    %v34 = vstv %s33
    %v35 = vmul.f32 %v34, %v27
    %v36 = vadd.f32 %v32, %v35
    %s37 = sld [smem:[#allocation2 + $0x2]]
    %v38 = vstv %s37
    %v39 = vmul.f32 %v38, %v29
    %v40 = vadd.f32 %v36, %v39
    %s41 = sld [smem:[#allocation2 + $0x3]]
    %v42 = vstv %s41
    %v43 = vadd.f32 %v40, %v42
    %s44 = sld [smem:[#allocation2 + $0x4]]
    %v45 = vstv %s44
    %v46 = vmul.f32 %v45, %v25
    %s47 = sld [smem:[#allocation2 + $0x5]]
    %v48 = vstv %s47
    %v49 = vmul.f32 %v48, %v27
    %v50 = vadd.f32 %v46, %v49
    %s51 = sld [smem:[#allocation2 + $0x6]]
    %v52 = vstv %s51
    %v53 = vmul.f32 %v52, %v29
    %v54 = vadd.f32 %v50, %v53
    %s55 = sld [smem:[#allocation2 + $0x7]]
    %v56 = vstv %s55
    %v57 = vadd.f32 %v54, %v56
    %s58 = sld [smem:[#allocation2 + $0x8]]
    %v59 = vstv %s58
    %v60 = vmul.f32 %v59, %v25
    %s61 = sld [smem:[#allocation2 + $0x9]]
    %v62 = vstv %s61
    %v63 = vmul.f32 %v62, %v27
    %v64 = vadd.f32 %v60, %v63
    %s65 = sld [smem:[#allocation2 + $0xa]]
    %v66 = vstv %s65
    %v67 = vmul.f32 %v66, %v29
    %v68 = vadd.f32 %v64, %v67
    %s69 = sld [smem:[#allocation2 + $0xb]]
    %v70 = vstv %s69
    %v71 = vadd.f32 %v68, %v70
    %v72 = vrcp.pop %v71
    %v73 = vmul.f32 %v71, %v72
    %v74 = vsub.f32 2.0, %v73
    %v75 = vmul.f32 %v72, %v74
    %v76 = vmul.f32 %v43, %v75
    %77 = vst [vmem:[#allocation5] sm:$0x1] %v76
    %v78 = vmul.f32 %v57, %v75
    %s79 = scalar_lea.vmem [#allocation5], 1
    %80 = vst [vmem:[%s79] sm:$0x1] %v78
    %s81 = scalar_lea.vmem %s1, 3
    %v82 = vld [vmem:[%s81] sm:$0x1]
    %s83 = scalar_lea.vmem %s1, 4
    %v84 = vld [vmem:[%s83] sm:$0x1]
    %s85 = scalar_lea.vmem %s1, 5
    %v86 = vld [vmem:[%s85] sm:$0x1]
    %s87 = sld [smem:[#allocation2 + $0xc]]
    %v88 = vstv %s87
    %v89 = vmul.f32 %v88, %v82
    %s90 = sld [smem:[#allocation2 + $0xd]]
    %v91 = vstv %s90
    %v92 = vmul.f32 %v91, %v84
    %v93 = vadd.f32 %v89, %v92
    %s94 = sld [smem:[#allocation2 + $0xe]]
    %v95 = vstv %s94
    %v96 = vmul.f32 %v95, %v86
    %v97 = vadd.f32 %v93, %v96
    %s98 = sld [smem:[#allocation2 + $0xf]]
    %v99 = vstv %s98
    %v100 = vadd.f32 %v97, %v99
    %s101 = sld [smem:[#allocation2 + $0x10]]
    %v102 = vstv %s101
    %v103 = vmul.f32 %v102, %v82
    %s104 = sld [smem:[#allocation2 + $0x11]]
    %v105 = vstv %s104
    %v106 = vmul.f32 %v105, %v84
    %v107 = vadd.f32 %v103, %v106
    %s108 = sld [smem:[#allocation2 + $0x12]]
    %v109 = vstv %s108
    %v110 = vmul.f32 %v109, %v86
    %v111 = vadd.f32 %v107, %v110
    %s112 = sld [smem:[#allocation2 + $0x13]]
    %v113 = vstv %s112
    %v114 = vadd.f32 %v111, %v113
    %s115 = sld [smem:[#allocation2 + $0x14]]
    %v116 = vstv %s115
    %v117 = vmul.f32 %v116, %v82
    %s118 = sld [smem:[#allocation2 + $0x15]]
    %v119 = vstv %s118
    %v120 = vmul.f32 %v119, %v84
    %v121 = vadd.f32 %v117, %v120
    %s122 = sld [smem:[#allocation2 + $0x16]]
    %v123 = vstv %s122
    %v124 = vmul.f32 %v123, %v86
    %v125 = vadd.f32 %v121, %v124
    %s126 = sld [smem:[#allocation2 + $0x17]]
    %v127 = vstv %s126
    %v128 = vadd.f32 %v125, %v127
    %v129 = vrcp.pop %v128
    %v130 = vmul.f32 %v128, %v129
    %v131 = vsub.f32 2.0, %v130
    %v132 = vmul.f32 %v129, %v131
    %v133 = vmul.f32 %v100, %v132
    %s134 = scalar_lea.vmem [#allocation5], 2
    %135 = vst [vmem:[%s134] sm:$0x1] %v133
    %v136 = vmul.f32 %v114, %v132
    %s137 = scalar_lea.vmem [#allocation5], 3
    %138 = vst [vmem:[%s137] sm:$0x1] %v136
    %s139 = scalar_lea.vmem %s1, 6
    %v140 = vld [vmem:[%s139] sm:$0x1]
    %s141 = scalar_lea.vmem %s1, 7
    %v142 = vld [vmem:[%s141] sm:$0x1]
    %s143 = scalar_lea.vmem %s1, 8
    %v144 = vld [vmem:[%s143] sm:$0x1]
    %s145 = sld [smem:[#allocation2 + $0x18]]
    %v146 = vstv %s145
    %v147 = vmul.f32 %v146, %v140
    %s148 = sld [smem:[#allocation2 + $0x19]]
    %v149 = vstv %s148
    %v150 = vmul.f32 %v149, %v142
    %v151 = vadd.f32 %v147, %v150
    %s152 = sld [smem:[#allocation2 + $0x1a]]
    %v153 = vstv %s152
    %v154 = vmul.f32 %v153, %v144
    %v155 = vadd.f32 %v151, %v154
    %s156 = sld [smem:[#allocation2 + $0x1b]]
    %v157 = vstv %s156
    %v158 = vadd.f32 %v155, %v157
    %s159 = sld [smem:[#allocation2 + $0x1c]]
    %v160 = vstv %s159
    %v161 = vmul.f32 %v160, %v140
    %s162 = sld [smem:[#allocation2 + $0x1d]]
    %v163 = vstv %s162
    %v164 = vmul.f32 %v163, %v142
    %v165 = vadd.f32 %v161, %v164
    %s166 = sld [smem:[#allocation2 + $0x1e]]
    %v167 = vstv %s166
    %v168 = vmul.f32 %v167, %v144
    %v169 = vadd.f32 %v165, %v168
    %s170 = sld [smem:[#allocation2 + $0x1f]]
    %v171 = vstv %s170
    %v172 = vadd.f32 %v169, %v171
    %s173 = sld [smem:[#allocation2 + $0x20]]
    %v174 = vstv %s173
    %v175 = vmul.f32 %v174, %v140
    %s176 = sld [smem:[#allocation2 + $0x21]]
    %v177 = vstv %s176
    %v178 = vmul.f32 %v177, %v142
    %v179 = vadd.f32 %v175, %v178
    %s180 = sld [smem:[#allocation2 + $0x22]]
    %v181 = vstv %s180
    %v182 = vmul.f32 %v181, %v144
    %v183 = vadd.f32 %v179, %v182
    %s184 = sld [smem:[#allocation2 + $0x23]]
    %v185 = vstv %s184
    %v186 = vadd.f32 %v183, %v185
    %v187 = vrcp.pop %v186
    %v188 = vmul.f32 %v186, %v187
    %v189 = vsub.f32 2.0, %v188
    %v190 = vmul.f32 %v187, %v189
    %v191 = vmul.f32 %v158, %v190
    %s192 = scalar_lea.vmem [#allocation5], 4
    %193 = vst [vmem:[%s192] sm:$0x1] %v191
    %v194 = vmul.f32 %v172, %v190
    %s195 = scalar_lea.vmem [#allocation5], 5
    %196 = vst [vmem:[%s195] sm:$0x1] %v194
    // Predicated region
    $region14: #{_device_forward.1} parent=1 // pred_check
      _
    $region15: #{_device_forward.1} parent=1 // pred_check_branch
      %198 = sbr.rel (0) target = $region17
    $region16: #{_device_forward.1} parent=1 // pred_region
      %s200 = ssub.s32 96, 96
      %201 = vsyncadd [#allocation3], %s200
      %s202 = sshll.u32 [#allocation5], 4
      %s203 = int_to_ptr.vmem [resolvable:$true] %s202
      %208 = dma.vmem_to_hbm [thread:$0]  %s203, 96, %s2, [#allocation3], 16, 16, 1
    $region17: #{_device_forward.1} parent=1 // pred_fallthru
      _
    // Predicated region
    $region18: #{_device_forward.1} parent=1 // pred_check
      _
    $region19: #{_device_forward.1} parent=1 // pred_check_branch
      %210 = sbr.rel (0) target = $region21
    $region20: #{_device_forward.1} parent=1 // pred_region
      %211 = dma.done [#allocation3], 96
    $region21: #{_device_forward.1} parent=1 // pred_fallthru
      _
    %212 = vsyncpa [#allocation3], 1
    %213 = vsyncpa [#allocation4], 1

</llo_original>
